<compile_context>
chip_gen: v7x
topology: tpu7x:2x2x1
jax: 0.10.0
libtpu: 0.0.40
codegen_flags: <defaults>
</compile_context>

<pallas_src>
import functools

import jax
import jax.numpy as jnp
from jax.experimental import pallas as pl
from jax.experimental.pallas import tpu as pltpu

_LANES = 128
_TARGET_BLOCK_BYTES = 4 * 1024 * 1024       # ~4 MiB per block (dtype-agnostic budget)
_SINGLE_BLOCK_BYTES = 1 * 1024 * 1024       # below this: one whole-slab block
_RAGGED_WHOLE_BLOCK_BYTES = 4 * 1024 * 1024 # ragged tensors up to this take one VMEM block
_VMEM_LIMIT_BYTES = 32 * 1024 * 1024        # headroom for 2x (in + out) 4 MiB buffers


def _copy_kernel(x_ref, o_ref):
    # Pure streaming copy: one block in, one block out.  No VPU work, so the
    # pipeline is pure DMA at the HBM roofline.
    o_ref[...] = x_ref[...]


def _round_up(v, m):
    return -(-v // m) * m


@jax.jit
def _pallas_clone(x):
    """Materialize a copy of `x` (torch Tensor.clone()) via a Pallas TPU kernel."""
    n = x.size
    if n == 0:
        return jnp.copy(x)  # degenerate; nothing for the kernel to stream

    itemsize = jnp.dtype(x.dtype).itemsize
    nbytes = n * itemsize
    cost = pl.CostEstimate(flops=0, transcendentals=0, bytes_accessed=2 * nbytes)

    if n % _LANES != 0:
        if nbytes <= _RAGGED_WHOLE_BLOCK_BYTES:
            # Small ragged tensor: copy the whole array as a single VMEM block
            # (legal because block_shape == full array dims).
            return pl.pallas_call(
                _copy_kernel,
                out_shape=jax.ShapeDtypeStruct(x.shape, x.dtype),
                cost_estimate=cost,
            )(x)
        # TODO(synk): large non-128-multiple tensors fall back to an XLA copy;
        # an in-kernel masked-tail path would keep this case in Pallas too.
        return jnp.copy(x)

    rows = n // _LANES
    if nbytes <= _SINGLE_BLOCK_BYTES:
        # Tiny tensor: one whole-slab block; splitting would only add per-step
        # overhead (even on v7x the total DMA time is well under a microsecond).
        block_rows = rows
    else:
        # Dtype-scaled byte budget (~4 MiB): f32 -> 8192 rows, bf16 -> 16384,
        # int8 -> 32768.  Also cap at ceil(rows/2) (rounded to a multiple of 32
        # for packed-dtype sublane alignment) so the grid always has >= 2
        # independent blocks and v7x's two TensorCores both get work.
        target_rows = max(32, _TARGET_BLOCK_BYTES // (itemsize * _LANES))
        half_rows = _round_up(-(-rows // 2), 32)
        block_rows = min(target_rows, half_rows)

    # Free lane-dense view of the contiguous buffer: no HBM copy, no cast.
    x2d = x.reshape(rows, _LANES)

    y2d = pl.pallas_call(
        _copy_kernel,
        out_shape=jax.ShapeDtypeStruct((rows, _LANES), x.dtype),
        grid_spec=pltpu.PrefetchScalarGridSpec(
            num_scalar_prefetch=0,
            grid=(pl.cdiv(rows, block_rows),),
            in_specs=[pl.BlockSpec((block_rows, _LANES), lambda i: (i, 0))],
            out_specs=pl.BlockSpec((block_rows, _LANES), lambda i: (i, 0)),
        ),
        compiler_params=pltpu.CompilerParams(
            # Independent blocks: lets v7x megacore split the row range.
            dimension_semantics=("parallel",),
            vmem_limit_bytes=_VMEM_LIMIT_BYTES,
        ),
        cost_estimate=cost,
    )(x2d)
    return y2d.reshape(x.shape)


class RecordingObserverPallas:
    """JAX/Pallas port of torch.ao.quantization.observer.RecordingObserver.

    forward(x): records a materialized clone of x (Pallas copy kernel) into
    self.tensor_val and returns x unchanged.  calculate_qparams raises, and
    get_tensor_value returns the recorded list, exactly like the PyTorch spec.
    """

    def __init__(self, dtype="quint8"):
        self.dtype = dtype
        self.is_dynamic = False
        self.tensor_val = []

    def forward(self, x):
        self.tensor_val.append(_pallas_clone(x))  # x.clone()
        return x

    __call__ = forward

    def calculate_qparams(self):
        raise Exception(
            "calculate_qparams should not be called for RecordingObserver"
        )

    def get_tensor_value(self):
        return self.tensor_val

    @classmethod
    def with_args(cls, **kwargs):
        # Lightweight stand-in for ObserverBase.with_args factory glue.
        return functools.partial(cls, **kwargs)


if __name__ == "__main__":
    key = jax.random.PRNGKey(0)

    # Primary NCHW input (2, 4, 16, 16): 2048 elems -> lane-dense (16, 128),
    # single whole-slab block.
    x = jax.random.normal(key, (2, 4, 16, 16), dtype=jnp.float32)

    obs = RecordingObserverPallas(dtype="quint8")
    y = obs(x)
    jax.block_until_ready(y)

    recorded = obs.get_tensor_value()
    assert len(recorded) == 1
    rec = jax.block_until_ready(recorded[0])
    assert rec.shape == x.shape and rec.dtype == x.dtype
    assert rec is not x                 # the clone is a distinct buffer
    assert jnp.array_equal(rec, x)      # ...with identical contents
    assert jnp.array_equal(y, x)        # forward is an identity pass-through

    # Second forward: 1.5 MiB f32 tensor -> split into 2 parallel blocks
    # (rows = 3072, block_rows = 1536).
    x2 = jax.random.normal(jax.random.fold_in(key, 1), (3, 8, 128, 128),
                           dtype=jnp.float32)
    _ = obs(x2)
    rec2 = jax.block_until_ready(obs.get_tensor_value()[1])
    assert jnp.array_equal(rec2, x2)

    # Third forward: bf16 exercises the dtype-scaled block sizing
    # (rows = 8192, block_rows = 4096, grid = 2).
    x3 = jax.random.normal(jax.random.fold_in(key, 2), (8, 1024, 128),
                           dtype=jnp.float32).astype(jnp.bfloat16)
    _ = obs(x3)
    rec3 = jax.block_until_ready(obs.get_tensor_value()[2])
    assert jnp.array_equal(rec3, x3)

    # Fourth forward: size not a multiple of 128, small -> whole-array block.
    x4 = jax.random.normal(jax.random.fold_in(key, 3), (3, 5),
                           dtype=jnp.float32)
    _ = obs(x4)
    rec4 = jax.block_until_ready(obs.get_tensor_value()[3])
    assert jnp.array_equal(rec4, x4)

    # Fifth forward: large ragged tensor -> hardened XLA-copy fallback
    # (previously risked a VMEM-oversized single block).
    x5 = jax.random.normal(jax.random.fold_in(key, 4), (1500, 1111),
                           dtype=jnp.float32)
    _ = obs(x5)
    rec5 = jax.block_until_ready(obs.get_tensor_value()[4])
    assert jnp.array_equal(rec5, x5)

    assert len(obs.get_tensor_value()) == 5

    # calculate_qparams must raise, per the PyTorch RecordingObserver spec.
    raised = False
    try:
        obs.calculate_qparams()
    except Exception:
        raised = True
    assert raised, "calculate_qparams must raise for RecordingObserver"

    print("KERNEL_OK")
</pallas_src>

<mosaic_0001>
module attributes {stable_mosaic.version = 11 : i64} {
  func.func @_copy_kernel(%arg0: i32, %arg1: memref<16x128xf32, #tpu.memory_space<vmem>>, %arg2: memref<16x128xf32, #tpu.memory_space<vmem>>) attributes {dimension_semantics = [#tpu.dimension_semantics<parallel>], iteration_bounds = array<i64: 1>, scalar_prefetch = 0 : i64, scratch_operands = 0 : i64, tpu.core_type = #tpu.core_type<tc>, window_params = [{transform_indices = @transform_0, window_bounds = array<i64: 16, 128>}, {transform_indices = @transform_1, window_bounds = array<i64: 16, 128>}]} {
    %c0 = arith.constant 0 : index
    %c0_0 = arith.constant 0 : index
    %0 = vector.load %arg1[%c0, %c0_0] : memref<16x128xf32, #tpu.memory_space<vmem>>, vector<16x128xf32>
    %c0_1 = arith.constant 0 : index
    %c0_2 = arith.constant 0 : index
    %1 = vector.load %arg2[%c0_1, %c0_2] : memref<16x128xf32, #tpu.memory_space<vmem>>, vector<16x128xf32>
    tpu.vector_store %arg2[%c0_1, %c0_2], %0 {strides = array<i32>} : memref<16x128xf32, #tpu.memory_space<vmem>>, vector<16x128xf32>,
    return
  }
  func.func @transform_0(%arg0: i32) -> (i32, i32) {
    %c0_i32 = arith.constant 0 : i32
    %c0_i32_0 = arith.constant 0 : i32
    return %arg0, %c0_i32 : i32, i32
  }
  func.func @transform_1(%arg0: i32) -> (i32, i32) {
    %c0_i32 = arith.constant 0 : i32
    %c0_i32_0 = arith.constant 0 : i32
    return %arg0, %c0_i32 : i32, i32
  }
}

</mosaic_0001>

<llo_original>
// kernel: _pallas_clone.1
$region0: #{_pallas_clone.1}
  #allocation0 [shape = 'u32[]', space=smem, size = 0x4, offset = 0x4, fixed_abs, tag = 'smem constant byte address 0x4 - core index']
  #allocation1 [shape = 'u32[144,128]{1,0:T(1,128)}', space=vmem, size = 0x12000, scoped, tag = 'internal scratch']
  %s0 = inlined_call_operand.vmem [shape: f32[16,128], index: 0, kind: input, shape index: {}]
  %s1 = inlined_call_operand.vmem [shape: f32[16,128], index: 1, kind: output, shape index: {}]
  %s2 = sld [smem:[#allocation0]]
  $region14: #{_pallas_clone.1} parent=0
    _
  %s4 = ssub.s32 1, %s2
  %s5 = scalar_select 0, %s4, %s2
  // Predicated region
  $region2: #{_pallas_clone.1} parent=0 // pred_check
    _
  $region3: #{_pallas_clone.1} parent=0 // pred_check_branch
    %7 = sbr.rel (0) target = $region5
  $region4: #{_pallas_clone.1} parent=0 // pred_region
    _
  $region5: #{_pallas_clone.1} parent=0 // pred_fallthru
    _
  %v8 = vld [vmem:[%s0] sm:$0xff]
  %v9 = vld [vmem:[%s0 + $0x8] sm:$0xff]
  %10 = vst [vmem:[%s1] sm:$0xff] %v8
  %11 = vst [vmem:[%s1 + $0x8] sm:$0xff] %v9
  // Predicated region
  $region6: #{_pallas_clone.1} parent=0 // pred_check
    _
  $region7: #{_pallas_clone.1} parent=0 // pred_check_branch
    %13 = sbr.rel (0) target = $region9
  $region8: #{_pallas_clone.1} parent=0 // pred_region
    _
  $region9: #{_pallas_clone.1} parent=0 // pred_fallthru
    _
  // Predicated region
  $region10: #{_pallas_clone.1} parent=0 // pred_check
    _
  $region11: #{_pallas_clone.1} parent=0 // pred_check_branch
    %15 = sbr.rel (0) target = $region13
  $region12: #{_pallas_clone.1} parent=0 // pred_region
    _
  $region13: #{_pallas_clone.1} parent=0 // pred_fallthru
    _

</llo_original>
